<compile_context>
chip_gen: v6e
topology: v6e:2x2x1
jax: 0.10.0
libtpu: 0.0.40
codegen_flags: <defaults>
</compile_context>

<pallas_src>
import jax
import jax.numpy as jnp
from jax import lax
from jax.experimental import pallas as pl
from jax.experimental.pallas import tpu as pltpu

EPS = 1e-5
LANE = 128
VMEM_LIMIT = 32 * 1024 * 1024


def _stats_kernel(p_ref, w_ref, psum_ref, pssq_ref):
    """Per-tile partial BN2 stats of z = W_eff @ p (bias excluded; cancels in the variance)."""
    z = jnp.dot(w_ref[...], p_ref[...], preferred_element_type=jnp.float32)   # (Cout, TM)
    psum_ref[...] = jnp.sum(z, axis=1, keepdims=True)[None]                   # (1, Cout, 1)
    pssq_ref[...] = jnp.sum(z * z, axis=1, keepdims=True)[None]


def _conv_bn_relu_kernel(p_ref, w_ref, c_ref, o_ref):
    """Fused conv + BN2 affine + ReLU (BN1/BN2 affines pre-folded into w_ref / c_ref)."""
    y = jnp.dot(w_ref[...], p_ref[...], preferred_element_type=jnp.float32)   # (Cout, TM)
    o_ref[...] = jnp.maximum(y + c_ref[...], 0.0)


def initial_block_forward(x_nchw, w_oihw, bias, g1, b1, g2, b2, *,
                          stride=2, tile_m=65536):
    N, Cin, H, W = x_nchw.shape
    assert Cin == 1
    Cout, _, k, _ = w_oihw.shape
    pad = (k - 1) // 2
    Ho = (H + 2 * pad - k) // stride + 1
    Wo = (W + 2 * pad - k) // stride + 1
    K = k * k
    M = N * Ho * Wo

    x = x_nchw.astype(jnp.float32).reshape(N, H, W)

    # ---- BN1 (BatchNorm2d(1), training mode): batch stats, folded into the conv.
    mean1 = jnp.mean(x)
    var1 = jnp.mean((x - mean1) ** 2)                       # biased variance
    scale1 = g1.astype(jnp.float32)[0] * lax.rsqrt(var1 + EPS)
    shift1 = b1.astype(jnp.float32)[0] - mean1 * scale1
    # Pad raw x with p0 so the BN1 affine maps padded taps to exactly 0 (PyTorch semantics),
    # then fold the affine into the conv weights/bias (assumes g1 != 0; true for this init).
    p0 = -shift1 / scale1
    w2d = w_oihw.reshape(Cout, K).astype(jnp.float32)       # (Cout, K)
    w_eff = w2d * scale1                                     # (Cout, K)
    b_eff = (bias.astype(jnp.float32)
             + shift1 * jnp.sum(w2d, axis=1)).reshape(Cout, 1)

    # ---- im2col with M on the lane axis, unpadded K rows (index/reshape XLA glue only).
    xp = jnp.pad(x, ((0, 0), (pad, pad), (pad, pad)), constant_values=p0)
    cols = []
    for kh in range(k):
        for kw in range(k):
            cols.append(xp[:, kh:kh + stride * (Ho - 1) + 1:stride,
                           kw:kw + stride * (Wo - 1) + 1:stride])
    patches = jnp.stack(cols, axis=0).reshape(K, M)          # (K, M)

    # Lane-align / tile the M axis (tm snapped to a multiple of 128; capped at aligned M).
    m_lane = ((M + LANE - 1) // LANE) * LANE
    tm = min(int(tile_m), m_lane)
    tm = max(LANE, (tm // LANE) * LANE)
    m_pad = ((M + tm - 1) // tm) * tm
    num_tiles = m_pad // tm
    if m_pad != M:
        # Zero tail columns contribute exactly 0 to both stats sums -> no mask, no correction.
        patches = jnp.pad(patches, ((0, 0), (0, m_pad - M)))

    # ---- Pass 1: per-tile partial BN2 stats (grid fully "parallel"; v7x megacore-shardable).
    psum, pssq = pl.pallas_call(
        _stats_kernel,
        out_shape=(jax.ShapeDtypeStruct((num_tiles, Cout, 1), jnp.float32),
                   jax.ShapeDtypeStruct((num_tiles, Cout, 1), jnp.float32)),
        grid=(num_tiles,),
        in_specs=[pl.BlockSpec((K, tm), lambda i: (0, i)),
                  pl.BlockSpec((Cout, K), lambda i: (0, 0))],
        out_specs=(pl.BlockSpec((1, Cout, 1), lambda i: (i, 0, 0)),
                   pl.BlockSpec((1, Cout, 1), lambda i: (i, 0, 0))),
        compiler_params=pltpu.CompilerParams(
            dimension_semantics=("parallel",),
            vmem_limit_bytes=VMEM_LIMIT),
        cost_estimate=pl.CostEstimate(
            flops=2 * m_pad * K * Cout + 3 * m_pad * Cout, transcendentals=0,
            bytes_accessed=4 * (K * m_pad + 2 * num_tiles * Cout)),
    )(patches, w_eff)

    # ---- BN2 finalize (tiny (Cout,) math). Variance is bias-free by construction.
    sum_z = jnp.sum(psum, axis=0)                            # (Cout, 1)
    ssq_z = jnp.sum(pssq, axis=0)                            # (Cout, 1)
    mean_z = sum_z / M
    var2 = jnp.maximum(ssq_z / M - mean_z * mean_z, 0.0)     # clamp fp residue
    inv_std2 = lax.rsqrt(var2 + EPS)
    scale2 = g2.reshape(Cout, 1).astype(jnp.float32) * inv_std2
    mean2 = mean_z + b_eff
    # Fold BN2 affine into the output pass: relu(scale2*(W_eff@p + b_eff - mean2) + b2)
    w_out = w_eff * scale2                                   # (Cout, K)
    c_out = scale2 * (b_eff - mean2) + b2.reshape(Cout, 1).astype(jnp.float32)

    # ---- Pass 2: fused conv + BN2 + ReLU, lane-dense (Cout, M) output, no conv slab.
    out = pl.pallas_call(
        _conv_bn_relu_kernel,
        out_shape=jax.ShapeDtypeStruct((Cout, m_pad), jnp.float32),
        grid=(num_tiles,),
        in_specs=[pl.BlockSpec((K, tm), lambda i: (0, i)),
                  pl.BlockSpec((Cout, K), lambda i: (0, 0)),
                  pl.BlockSpec((Cout, 1), lambda i: (0, 0))],
        out_specs=pl.BlockSpec((Cout, tm), lambda i: (0, i)),
        compiler_params=pltpu.CompilerParams(
            dimension_semantics=("parallel",),
            vmem_limit_bytes=VMEM_LIMIT),
        cost_estimate=pl.CostEstimate(
            flops=2 * m_pad * K * Cout + 2 * m_pad * Cout, transcendentals=0,
            bytes_accessed=4 * (K * m_pad + Cout * m_pad)),
    )(patches, w_out, c_out)

    # lane-dense (Cout, M) slab -> NCHW like PyTorch.
    return out[:, :M].reshape(Cout, N, Ho, Wo).transpose(1, 0, 2, 3)


def reference_forward(x_nchw, w_oihw, bias, g1, b1, g2, b2, *, stride=2):
    """Pure-JAX reference mirroring the PyTorch module in training mode."""
    Cout, _, k, _ = w_oihw.shape
    pad = (k - 1) // 2
    m = jnp.mean(x_nchw)
    v = jnp.mean((x_nchw - m) ** 2)
    xn = (x_nchw - m) * lax.rsqrt(v + EPS) * g1 + b1
    y = lax.conv_general_dilated(
        xn, w_oihw, (stride, stride), [(pad, pad), (pad, pad)],
        dimension_numbers=("NCHW", "OIHW", "NCHW"))
    y = y + bias[None, :, None, None]
    m2 = jnp.mean(y, axis=(0, 2, 3), keepdims=True)
    v2 = jnp.mean((y - m2) ** 2, axis=(0, 2, 3), keepdims=True)
    yn = (y - m2) * lax.rsqrt(v2 + EPS) * g2[None, :, None, None] + b2[None, :, None, None]
    return jnp.maximum(yn, 0.0)


if __name__ == "__main__":
    key = jax.random.PRNGKey(0)
    k_x, k_w, k_b = jax.random.split(key, 3)

    # module hyper-params
    out_channels, kernel_size, stride = 8, 3, 2
    N, H, W = 2, 16, 16

    # deterministic "init" matching the PyTorch module's __init__
    x = jax.random.normal(k_x, (N, 1, H, W), dtype=jnp.float32)
    fan_in = 1 * kernel_size * kernel_size
    w = jax.random.normal(k_w, (out_channels, 1, kernel_size, kernel_size),
                          dtype=jnp.float32) * jnp.sqrt(2.0 / fan_in)   # kaiming_normal_
    bias = jax.random.uniform(k_b, (out_channels,), dtype=jnp.float32,
                              minval=-1.0 / jnp.sqrt(fan_in),
                              maxval=1.0 / jnp.sqrt(fan_in))            # default conv bias init
    g1 = jnp.ones((1,), jnp.float32)             # bn_data weight = 1
    b1 = jnp.zeros((1,), jnp.float32)            # bn_data bias   = 0
    g2 = jnp.ones((out_channels,), jnp.float32)  # bn weight      = 1
    b2 = jnp.zeros((out_channels,), jnp.float32) # bn bias        = 0

    out = initial_block_forward(x, w, bias, g1, b1, g2, b2, stride=stride)
    out = jax.block_until_ready(out)

    ref = reference_forward(x, w, bias, g1, b1, g2, b2, stride=stride)
    assert out.shape == ref.shape == (N, out_channels, H // stride, W // stride)
    err = jnp.max(jnp.abs(out - ref))
    assert jnp.allclose(out, ref, atol=1e-4, rtol=1e-4), f"max abs err {err}"

    print("KERNEL_OK")
</pallas_src>

<mosaic_0001>
module attributes {stable_mosaic.version = 11 : i64} {
  func.func @_stats_kernel(%arg0: i32, %arg1: memref<9x128xf32, #tpu.memory_space<vmem>>, %arg2: memref<8x9xf32, #tpu.memory_space<vmem>>, %arg3: memref<1x8x1xf32, #tpu.memory_space<vmem>>, %arg4: memref<1x8x1xf32, #tpu.memory_space<vmem>>) attributes {dimension_semantics = [#tpu.dimension_semantics<parallel>], iteration_bounds = array<i64: 1>, scalar_prefetch = 0 : i64, scratch_operands = 0 : i64, tpu.core_type = #tpu.core_type<tc>, window_params = [{transform_indices = @transform_0, window_bounds = array<i64: 9, 128>}, {pipeline_mode = #tpu.pipeline_mode<synchronous>, transform_indices = @transform_1, window_bounds = array<i64: 8, 9>}, {transform_indices = @transform_2, window_bounds = array<i64: 1, 8, 1>}, {transform_indices = @transform_3, window_bounds = array<i64: 1, 8, 1>}]} {
    %c0 = arith.constant 0 : index
    %c0_0 = arith.constant 0 : index
    %0 = vector.load %arg2[%c0, %c0_0] : memref<8x9xf32, #tpu.memory_space<vmem>>, vector<8x9xf32>
    %c0_1 = arith.constant 0 : index
    %c0_2 = arith.constant 0 : index
    %1 = vector.load %arg1[%c0_1, %c0_2] : memref<9x128xf32, #tpu.memory_space<vmem>>, vector<9x128xf32>
    %cst = arith.constant dense<0.000000e+00> : vector<8x128xf32>
    %2 = tpu.matmul %0, %1, %cst {dimension_numbers = #tpu.dot_dimension_numbers<[1], [0], [0], [1], [0, 0, 1, 1], [], []>} : vector<8x9xf32>, vector<9x128xf32>, vector<8x128xf32> -> vector<8x128xf32>
    %cst_3 = arith.constant dense<0.000000e+00> : vector<8xf32>
    %3 = vector.multi_reduction <add>, %2, %cst_3 [1] : vector<8x128xf32> to vector<8xf32>
    %4 = vector.shape_cast %3 : vector<8xf32> to vector<8x1xf32>
    %5 = vector.shape_cast %4 : vector<8x1xf32> to vector<1x8x1xf32>
    %c0_4 = arith.constant 0 : index
    %c0_5 = arith.constant 0 : index
    %c0_6 = arith.constant 0 : index
    %6 = vector.load %arg3[%c0_4, %c0_5, %c0_6] : memref<1x8x1xf32, #tpu.memory_space<vmem>>, vector<1x8x1xf32>
    tpu.vector_store %arg3[%c0_4, %c0_5, %c0_6], %5 {strides = array<i32>} : memref<1x8x1xf32, #tpu.memory_space<vmem>>, vector<1x8x1xf32>,
    %7 = arith.mulf %2, %2 : vector<8x128xf32>
    %cst_7 = arith.constant dense<0.000000e+00> : vector<8xf32>
    %8 = vector.multi_reduction <add>, %7, %cst_7 [1] : vector<8x128xf32> to vector<8xf32>
    %9 = vector.shape_cast %8 : vector<8xf32> to vector<8x1xf32>
    %10 = vector.shape_cast %9 : vector<8x1xf32> to vector<1x8x1xf32>
    %c0_8 = arith.constant 0 : index
    %c0_9 = arith.constant 0 : index
    %c0_10 = arith.constant 0 : index
    %11 = vector.load %arg4[%c0_8, %c0_9, %c0_10] : memref<1x8x1xf32, #tpu.memory_space<vmem>>, vector<1x8x1xf32>
    tpu.vector_store %arg4[%c0_8, %c0_9, %c0_10], %10 {strides = array<i32>} : memref<1x8x1xf32, #tpu.memory_space<vmem>>, vector<1x8x1xf32>,
    return
  }
  func.func @transform_0(%arg0: i32) -> (i32, i32) {
    %c0_i32 = arith.constant 0 : i32
    %c0_i32_0 = arith.constant 0 : i32
    return %c0_i32, %arg0 : i32, i32
  }
  func.func @transform_1(%arg0: i32) -> (i32, i32) {
    %c0_i32 = arith.constant 0 : i32
    %c0_i32_0 = arith.constant 0 : i32
    %c0_i32_1 = arith.constant 0 : i32
    return %c0_i32, %c0_i32_0 : i32, i32
  }
  func.func @transform_2(%arg0: i32) -> (i32, i32, i32) {
    %c0_i32 = arith.constant 0 : i32
    %c0_i32_0 = arith.constant 0 : i32
    %c0_i32_1 = arith.constant 0 : i32
    return %arg0, %c0_i32, %c0_i32_0 : i32, i32, i32
  }
  func.func @transform_3(%arg0: i32) -> (i32, i32, i32) {
    %c0_i32 = arith.constant 0 : i32
    %c0_i32_0 = arith.constant 0 : i32
    %c0_i32_1 = arith.constant 0 : i32
    return %arg0, %c0_i32, %c0_i32_0 : i32, i32, i32
  }
}

</mosaic_0001>

<llo_original>
// kernel: tpu_custom_call.1
$region0: #{tpu_custom_call.1}
  #allocation0 [shape = 'u32[]', space=smem, size = 0x4, offset = 0x4, fixed_abs, tag = 'smem constant byte address 0x4 - core index']
  #allocation1 [shape = 'u32[144,128]{1,0:T(1,128)}', space=vmem, size = 0x12000, scoped, tag = 'internal scratch']
  %s0 = inlined_call_operand.hbm [shape: f32[9,128], index: 0, kind: input, shape index: {}]
  %s1 = inlined_call_operand.hbm [shape: f32[8,9], index: 1, kind: input, shape index: {}]
  %s2 = inlined_call_operand.vmem [shape: f32[1,8,1], index: 2, kind: output, shape index: {0}]
  %s3 = inlined_call_operand.vmem [shape: f32[1,8,1], index: 3, kind: output, shape index: {1}]
  %4 = xla_tuple %s2, %s3
  %s5 = sld [smem:[#allocation0]]
  $region34: #{tpu_custom_call.1} parent=0
    _
  %s7 = ssub.s32 1, %s5
  %s8 = scalar_select 0, %s7, %s5
  $region1: #{tpu_custom_call.1} parent=0
    #allocation2 [shape = 'u8[8192]{0}', space=vmem, size = 0x2000, scoped, tag = 'input window, operand 0, single buffered']
    #allocation3 [shape = 's32[1]{0}', space=sflag, size = 0x4, scoped, tag = 'scoped memory for tpu_custom_call.1']
    #allocation4 [shape = 'u8[4096]{0}', space=vmem, size = 0x1000, scoped, tag = 'input window, operand 1, single buffered']
    #allocation5 [shape = 's32[1]{0}', space=sflag, size = 0x4, scoped, tag = 'scoped memory for tpu_custom_call.1']
    %9 = vsyncpa [#allocation3], 0
    %10 = vsyncpa [#allocation5], 0
    // Predicated region
    $region2: #{tpu_custom_call.1} parent=1 // pred_check
      _
    $region3: #{tpu_custom_call.1} parent=1 // pred_check_branch
      %12 = sbr.rel (0) target = $region5
    $region4: #{tpu_custom_call.1} parent=1 // pred_region
      %s14 = ssub.s32 256, 256
      %15 = vsyncadd [#allocation3], %s14
      %s16 = sshll.u32 [#allocation2], 4
      %s17 = int_to_ptr.vmem [resolvable:$true] %s16
      %22 = dma.hbm_to_vmem [thread:$0]  %s0, 256, %s17, [#allocation3], 128, 128, 8
    $region5: #{tpu_custom_call.1} parent=1 // pred_fallthru
      _
    // Predicated region
    $region6: #{tpu_custom_call.1} parent=1 // pred_check
      _
    $region7: #{tpu_custom_call.1} parent=1 // pred_check_branch
      %24 = sbr.rel (0) target = $region9
    $region8: #{tpu_custom_call.1} parent=1 // pred_region
      %s26 = ssub.s32 128, 128
      %27 = vsyncadd [#allocation5], %s26
      %s29 = sshll.u32 [#allocation4], 4
      %s30 = int_to_ptr.vmem [resolvable:$true] %s29
      %32 = dma.hbm_to_vmem [thread:$0]  %s1, 128, %s30, [#allocation5]
    $region9: #{tpu_custom_call.1} parent=1 // pred_fallthru
      _
    // Predicated region
    $region10: #{tpu_custom_call.1} parent=1 // pred_check
      _
    $region11: #{tpu_custom_call.1} parent=1 // pred_check_branch
      %34 = sbr.rel (0) target = $region13
    $region12: #{tpu_custom_call.1} parent=1 // pred_region
      %35 = dma.done [#allocation3], 256
    $region13: #{tpu_custom_call.1} parent=1 // pred_fallthru
      _
    // Predicated region
    $region14: #{tpu_custom_call.1} parent=1 // pred_check
      _
    $region15: #{tpu_custom_call.1} parent=1 // pred_check_branch
      %37 = sbr.rel (0) target = $region17
    $region16: #{tpu_custom_call.1} parent=1 // pred_region
      %38 = dma.done [#allocation5], 128
    $region17: #{tpu_custom_call.1} parent=1 // pred_fallthru
      _
    %v39 = vld [vmem:[#allocation4] sm:$0xff]
    %v40 = vld [vmem:[#allocation2] sm:$0xff]
    %v41 = vld [vmem:[#allocation2 + $0x8] sm:$0x1]
    %vm42 = vcmask 72704
    %v44 = vsel %vm42, %v39, 0
    %vm46 = vcmask 1040384
    %v48 = vsel %vm46, %v41, 0
    %50 = vmatprep.subr.mxu0 0.0
    %51 = vmatpush1.msra.mxu0 0.0
    %52 = vmatprep.subr.mxu0 0.0
    %53 = vmatpush1.msra.mxu0 0.0
    %54 = vmatprep.subr.mxu0 0.0
    %55 = vmatpush1.msra.mxu0 0.0
    %56 = vmatprep.subr.mxu0 0.0
    %57 = vmatpush1.msra.mxu0 0.0
    %58 = vmatprep.subr.mxu0 0.0
    %59 = vmatpush1.msra.mxu0 0.0
    %60 = vmatprep.subr.mxu0 0.0
    %61 = vmatpush1.msra.mxu0 0.0
    %62 = vmatprep.subr.mxu0 0.0
    %63 = vmatpush1.msra.mxu0 0.0
    %64 = vmatprep.subr.mxu0 0.0
    %65 = vmatpush1.msra.mxu0 0.0
    %66 = vmatprep.subr.mxu0 0.0
    %67 = vmatpush1.msra.mxu0 0.0
    %68 = vmatprep.subr.mxu0 0.0
    %69 = vmatpush1.msra.mxu0 0.0
    %70 = vmatprep.subr.mxu0 0.0
    %71 = vmatpush1.msra.mxu0 0.0
    %72 = vmatprep.subr.mxu0 0.0
    %73 = vmatpush1.msra.mxu0 0.0
    %74 = vmatprep.subr.mxu0 0.0
    %75 = vmatpush1.msra.mxu0 0.0
    %76 = vmatprep.subr.mxu0 0.0
    %77 = vmatpush1.msra.mxu0 0.0
    %78 = vmatprep.subr.mxu0 0.0
    %79 = vmatpush1.msra.mxu0 %v48
    %80 = vmatprep.subr.mxu0 0.0
    %81 = vmatpush1.msra.mxu0 %v40
    %82 = vmatprep.subr.mxu0 0.0
    %83 = vmatpush2.msra.mxu0 0.0
    %84 = vmatprep.subr.mxu0 0.0
    %85 = vmatpush2.msra.mxu0 0.0
    %86 = vmatprep.subr.mxu0 0.0
    %87 = vmatpush2.msra.mxu0 0.0
    %88 = vmatprep.subr.mxu0 0.0
    %89 = vmatpush2.msra.mxu0 0.0
    %90 = vmatprep.subr.mxu0 0.0
    %91 = vmatpush2.msra.mxu0 0.0
    %92 = vmatprep.subr.mxu0 0.0
    %93 = vmatpush2.msra.mxu0 0.0
    %94 = vmatprep.subr.mxu0 0.0
    %95 = vmatpush2.msra.mxu0 0.0
    %96 = vmatprep.subr.mxu0 0.0
    %97 = vmatpush2.msra.mxu0 0.0
    %98 = vmatprep.subr.mxu0 0.0
    %99 = vmatpush2.msra.mxu0 0.0
    %100 = vmatprep.subr.mxu0 0.0
    %101 = vmatpush2.msra.mxu0 0.0
    %102 = vmatprep.subr.mxu0 0.0
    %103 = vmatpush2.msra.mxu0 0.0
    %104 = vmatprep.subr.mxu0 0.0
    %105 = vmatpush2.msra.mxu0 0.0
    %106 = vmatprep.subr.mxu0 0.0
    %107 = vmatpush2.msra.mxu0 0.0
    %108 = vmatprep.subr.mxu0 0.0
    %109 = vmatpush2.msra.mxu0 0.0
    %110 = vmatprep.subr.mxu0 0.0
    %111 = vmatpush2.msra.mxu0 0.0
    %112 = vmatprep.subr.mxu0 0.0
    %113 = vmatpush2.msra.mxu0 0.0
    %114 = vmatprep.mubr.f32.mxu0 0.0
    %115 = vmatmul.mubr.f32.gmra.mxu0 %v44
    %v116 = vpop.f32.mrf.mxu0
    %v117 = vadd.f32 0.0, %v116
    %v118 = vpop.f32.mrf.mxu0
    %119 = vdwg.mxu0
    %120 = vadd.xlane.f32.xlu0 %v117
    %v121 = vpop.xlane.xlu0 %120
    %vm122 = vcmask 7168
    %123 = vst.msk [vmem:[%s2] sm:$0xff] %vm122, %v121
    %v124 = vmul.f32 %v117, %v117
    %125 = vadd.xlane.f32.xlu0 %v124
    %v126 = vpop.xlane.xlu0 %125
    %127 = vst.msk [vmem:[%s3] sm:$0xff] %vm122, %v126
    // Predicated region
    $region18: #{tpu_custom_call.1} parent=1 // pred_check
      _
    $region19: #{tpu_custom_call.1} parent=1 // pred_check_branch
      %129 = sbr.rel (0) target = $region21
    $region20: #{tpu_custom_call.1} parent=1 // pred_region
      _
    $region21: #{tpu_custom_call.1} parent=1 // pred_fallthru
      _
    // Predicated region
    $region22: #{tpu_custom_call.1} parent=1 // pred_check
      _
    $region23: #{tpu_custom_call.1} parent=1 // pred_check_branch
      %131 = sbr.rel (0) target = $region25
    $region24: #{tpu_custom_call.1} parent=1 // pred_region
      _
    $region25: #{tpu_custom_call.1} parent=1 // pred_fallthru
      _
    // Predicated region
    $region26: #{tpu_custom_call.1} parent=1 // pred_check
      _
    $region27: #{tpu_custom_call.1} parent=1 // pred_check_branch
      %133 = sbr.rel (0) target = $region29
    $region28: #{tpu_custom_call.1} parent=1 // pred_region
      _
    $region29: #{tpu_custom_call.1} parent=1 // pred_fallthru
      _
    // Predicated region
    $region30: #{tpu_custom_call.1} parent=1 // pred_check
      _
    $region31: #{tpu_custom_call.1} parent=1 // pred_check_branch
      %135 = sbr.rel (0) target = $region33
    $region32: #{tpu_custom_call.1} parent=1 // pred_region
      _
    $region33: #{tpu_custom_call.1} parent=1 // pred_fallthru
      _
    %136 = vsyncpa [#allocation3], 1
    %137 = vsyncpa [#allocation5], 1

</llo_original>
